<compile_context>
chip_gen: v5e
topology: v5e:2x2
jax: 0.10.0
libtpu: 0.0.40
codegen_flags: <defaults>
</compile_context>

<pallas_src>
import functools

import jax
import jax.numpy as jnp
from jax.experimental import pallas as pl
from jax.experimental.pallas import tpu as pltpu


# ---------------------------------------------------------------------------
# Kernel
# ---------------------------------------------------------------------------
def _sae_kernel(thresh_ref, x_ref, w_enc_ref, b_enc_ref, w_dec_ref, b_dec_ref,
                *refs, tf, n_f, boundary_cols, write_feats):
    """One (batch tile, feature tile) step of the fused SAE forward.

    thresh_ref : SMEM (1,) f32              -- the `threshold` buffer
    x_ref      : VMEM (tb, D)
    w_enc_ref  : VMEM (D, tf)
    b_enc_ref  : VMEM (1, tf)
    w_dec_ref  : VMEM (tf, D)
    b_dec_ref  : VMEM (1, D)
    refs       : [xhat_ref, (feats_ref,) xc_ref, acc_ref]
      xhat_ref  : VMEM (tb, D)  output (written on the last feature tile)
      feats_ref : VMEM (tb, tf) output (only when write_feats)
      xc_ref    : VMEM (tb, D)  scratch: x - b_dec, computed once per batch tile
      acc_ref   : VMEM (tb, D)  f32 scratch accumulator for the decoder
    """
    xhat_ref = refs[0]
    if write_feats:
        feats_ref, xc_ref, acc_ref = refs[1], refs[2], refs[3]
    else:
        feats_ref = None
        xc_ref, acc_ref = refs[1], refs[2]

    f_idx = pl.program_id(1)
    last = n_f - 1

    # Hoist (x - b_dec): compute once per batch tile, reuse across feature tiles.
    @pl.when(f_idx == 0)
    def _center():
        xc_ref[...] = x_ref[...] - b_dec_ref[...].astype(x_ref.dtype)

    xc = xc_ref[...]

    # Encoder tile on the MXU, f32 accumulation (no f32 weight up-casts).
    pre = jnp.dot(xc, w_enc_ref[...], preferred_element_type=jnp.float32)
    pre = pre + b_enc_ref[...].astype(jnp.float32)               # (tb, tf)

    # relu + threshold fused into a single select:
    #   relu(pre) * (relu(pre) > thresh)  ==  where(pre > max(thresh, 0), pre, 0)
    gate = jnp.maximum(thresh_ref[0], jnp.float32(0.0))
    if boundary_cols is not None:
        # Matryoshka boundary (only emitted when max_act_index is not tile
        # aligned): the inactive columns of the *last* feature tile get a +inf
        # gate so they are zeroed by the same select. This is a (1, tf) row ->
        # O(tf) per step; non-boundary tiles effectively keep the scalar gate.
        col = jax.lax.broadcasted_iota(jnp.int32, (1, tf), 1)
        inactive = jnp.logical_and(f_idx == last, col >= boundary_cols)
        gate = jnp.where(inactive, jnp.float32(jnp.inf), gate)
    acts = jnp.where(pre > gate, pre, jnp.float32(0.0))

    if write_feats:
        feats_ref[...] = acts.astype(feats_ref.dtype)

    # Decoder partial product for this feature tile.
    dec_partial = jnp.dot(acts.astype(w_dec_ref.dtype), w_dec_ref[...],
                          preferred_element_type=jnp.float32)

    @pl.when(f_idx == 0)
    def _init_acc():               # first tile: direct write (no zero-init + add)
        acc_ref[...] = dec_partial

    @pl.when(f_idx != 0)
    def _accumulate():
        acc_ref[...] += dec_partial

    @pl.when(f_idx == last)
    def _finalize():
        xhat_ref[...] = (acc_ref[...] +
                         b_dec_ref[...].astype(jnp.float32)).astype(xhat_ref.dtype)


# ---------------------------------------------------------------------------
# Generation-aware tile selection
# ---------------------------------------------------------------------------
_GEN_CONFIG = {
    # tb target, tf cap, vmem_limit_bytes handed to the compiler
    "v5e": dict(tb=256, tf_cap=512, vmem=96 << 20),    # 128 MiB phys, 16 MiB scoped default
    "v6e": dict(tb=768, tf_cap=1024, vmem=100 << 20),  # 128 MiB phys, 32 MiB scoped default
    "v7x": dict(tb=512, tf_cap=512, vmem=48 << 20),    # 64 MiB phys -> leave headroom
    "unknown": dict(tb=256, tf_cap=512, vmem=48 << 20),
}


def _tpu_generation():
    try:
        dev = jax.devices()[0]
        if dev.platform != "tpu":
            return "unknown"
        kind = dev.device_kind.lower()
    except Exception:
        return "unknown"
    if "v5 lite" in kind or "v5e" in kind or "v5litepod" in kind:
        return "v5e"
    if "v6" in kind:
        return "v6e"
    if "v7" in kind or "7x" in kind:
        return "v7x"
    return "unknown"


def _round_up(v, m):
    return ((v + m - 1) // m) * m


def _pick_feature_tile(F, cap):
    cap = min(cap, F)
    for c in range((cap // 128) * 128, 127, -128):
        if F % c == 0:
            return c
    return F   # F < 128 or no multiple-of-128 divisor: use whole feature dim


def _vmem_bytes(tb, tf, D, in_isz, w_isz, out_isz, write_feats):
    b = 2 * tb * D * in_isz                 # x (double-buffered input)
    b += 2 * D * tf * w_isz                 # W_enc tile
    b += 2 * tf * D * w_isz                 # W_dec tile
    b += 2 * (tf + D) * w_isz               # b_enc / b_dec tiles
    b += 2 * tb * D * out_isz               # x_hat output
    if write_feats:
        b += 2 * tb * tf * out_isz          # feats output
    b += tb * D * in_isz                    # xc scratch
    b += tb * D * 4                         # f32 accumulator scratch
    return b


# ---------------------------------------------------------------------------
# Wrapper
# ---------------------------------------------------------------------------
def matryoshka_batch_topk_sae_forward(x, W_enc, b_enc, W_dec, b_dec, threshold,
                                      max_act_index, output_features=False,
                                      tb=None, tf=None, vmem_limit_bytes=None):
    """JAX wrapper mirroring MatryoshkaBatchTopKSAE.forward (use_threshold=True)."""
    B, D = x.shape
    F = W_enc.shape[1]
    assert W_enc.shape == (D, F)
    assert W_dec.shape == (F, D)

    out_dtype = x.dtype
    max_act_index = max(0, min(int(max_act_index), F))

    if max_act_index == 0:
        # No active groups: features are all zero, x_hat is just b_dec.
        x_hat = jnp.broadcast_to(b_dec.reshape(1, D).astype(out_dtype), (B, D))
        if output_features:
            return x_hat, jnp.zeros((B, F), out_dtype)
        return x_hat

    # ---- Generation-aware tile selection (obeys the (8, 128) constraints). ---
    gen = _tpu_generation()
    cfg = _GEN_CONFIG[gen]
    if vmem_limit_bytes is None:
        vmem_limit_bytes = cfg["vmem"]

    in_isz = jnp.dtype(x.dtype).itemsize
    w_isz = jnp.dtype(W_enc.dtype).itemsize
    out_isz = jnp.dtype(out_dtype).itemsize

    tf_auto = tf is None
    if tf_auto:
        tf = _pick_feature_tile(F, cfg["tf_cap"])
    assert F % tf == 0 and (tf % 128 == 0 or tf == F), (F, tf)

    tb_auto = tb is None
    if tb_auto:
        tb = min(cfg["tb"], _round_up(B, 8))
        # v7x: keep >= 2 batch tiles so the "parallel" axis feeds both cores.
        if gen == "v7x" and tb >= _round_up(B, 8) and tb >= 256:
            tb = _round_up((tb + 1) // 2, 8)
    assert tb % 8 == 0, tb

    # Shrink auto-chosen tiles until the pipelined working set fits the budget.
    budget = max(vmem_limit_bytes - (4 << 20), 4 << 20)
    if tb_auto:
        while (_vmem_bytes(tb, tf, D, in_isz, w_isz, out_isz, output_features)
               > budget and tb > 128):
            tb = max(128, tb - 128)
    if tf_auto:
        while (_vmem_bytes(tb, tf, D, in_isz, w_isz, out_isz, output_features)
               > budget and tf > 128):
            smaller = _pick_feature_tile(F, tf - 128)
            if smaller >= tf:
                break
            tf = smaller

    pad_b = (-B) % tb
    xp = jnp.pad(x, ((0, pad_b), (0, 0))) if pad_b else x
    Bp = B + pad_b

    n_b = Bp // tb
    n_f = -(-max_act_index // tf)          # ceil-div: only active feature tiles
    F_vis = n_f * tf                       # <= F because tf divides F
    needs_mask = max_act_index < F_vis
    boundary_cols = (max_act_index - (n_f - 1) * tf) if needs_mask else None

    b_enc_2d = b_enc.reshape(1, F)
    b_dec_2d = b_dec.reshape(1, D)
    thresh_arr = jnp.asarray(threshold, dtype=jnp.float32).reshape(1)

    # TODO(synk): max_act_index (active_groups) is compile-time static because it
    # sets the grid extent; a changed active-group count recompiles (rare event).
    kernel = functools.partial(_sae_kernel, tf=tf, n_f=n_f,
                               boundary_cols=boundary_cols,
                               write_feats=output_features)

    cost = pl.CostEstimate(
        flops=int(4 * Bp * D * F_vis),
        transcendentals=0,
        bytes_accessed=int(Bp * D * (in_isz + out_isz)            # x read, x_hat write
                           + n_b * 2 * D * F_vis * w_isz          # W_enc+W_dec per batch tile
                           + n_b * (F_vis + D) * w_isz            # biases per batch tile
                           + (Bp * F_vis * out_isz if output_features else 0)),
    )

    in_specs = [
        pl.BlockSpec(memory_space=pltpu.MemorySpace.SMEM),      # threshold
        pl.BlockSpec((tb, D), lambda b, f: (b, 0)),             # x
        pl.BlockSpec((D, tf), lambda b, f: (0, f)),             # W_enc
        pl.BlockSpec((1, tf), lambda b, f: (0, f)),             # b_enc
        pl.BlockSpec((tf, D), lambda b, f: (f, 0)),             # W_dec
        pl.BlockSpec((1, D), lambda b, f: (0, 0)),              # b_dec
    ]
    xhat_spec = pl.BlockSpec((tb, D), lambda b, f: (b, 0))
    xhat_shape = jax.ShapeDtypeStruct((Bp, D), out_dtype)
    if output_features:
        out_specs = (xhat_spec, pl.BlockSpec((tb, tf), lambda b, f: (b, f)))
        out_shape = (xhat_shape, jax.ShapeDtypeStruct((Bp, F_vis), out_dtype))
    else:
        out_specs = xhat_spec
        out_shape = xhat_shape

    grid_spec = pltpu.PrefetchScalarGridSpec(
        num_scalar_prefetch=0,
        grid=(n_b, n_f),
        in_specs=in_specs,
        out_specs=out_specs,
        scratch_shapes=[pltpu.VMEM((tb, D), x.dtype),            # xc = x - b_dec
                        pltpu.VMEM((tb, D), jnp.float32)],       # decoder accumulator
    )

    result = pl.pallas_call(
        kernel,
        out_shape=out_shape,
        grid_spec=grid_spec,
        compiler_params=pltpu.CompilerParams(
            dimension_semantics=("parallel", "arbitrary"),
            vmem_limit_bytes=int(vmem_limit_bytes)),
        cost_estimate=cost,
    )(thresh_arr, xp, W_enc, b_enc_2d, W_dec, b_dec_2d)

    if not output_features:
        x_hat_p = result
        return x_hat_p[:B] if pad_b else x_hat_p

    x_hat_p, feats_vis = result
    x_hat = x_hat_p[:B] if pad_b else x_hat_p
    feats_act = feats_vis[:B] if pad_b else feats_vis
    if F_vis < F:
        # TODO(synk): for very large F, pass a pre-zeroed (Bp, F) buffer via
        # input_output_aliases and point the feats out_spec at the full-F output
        # instead of padding here (saves one extra XLA copy of the active region).
        feats = jnp.pad(feats_act, ((0, 0), (0, F - F_vis)))
    else:
        feats = feats_act
    return x_hat, feats


# ---------------------------------------------------------------------------
# Parameter init + pure-JAX reference
# ---------------------------------------------------------------------------
def init_params(key, activation_dim, dict_size):
    """Parameter init matching the module's __init__ semantics:
    W_dec ~ kaiming_uniform then rows normalized to unit norm; W_enc = W_dec.T;
    biases zero; threshold buffer = -1.0."""
    bound = jnp.sqrt(6.0 / activation_dim)  # kaiming_uniform fan_in bound
    W_dec = jax.random.uniform(key, (dict_size, activation_dim),
                               minval=-bound, maxval=bound, dtype=jnp.float32)
    W_dec = W_dec / jnp.linalg.norm(W_dec, axis=1, keepdims=True)
    W_enc = W_dec.T
    b_enc = jnp.zeros((dict_size,), jnp.float32)
    b_dec = jnp.zeros((activation_dim,), jnp.float32)
    threshold = jnp.float32(-1.0)
    return W_enc, b_enc, W_dec, b_dec, threshold


def reference_forward(x, W_enc, b_enc, W_dec, b_dec, threshold, max_act_index):
    post_relu = jax.nn.relu((x - b_dec) @ W_enc + b_enc)
    f = post_relu * (post_relu > threshold)
    col = jnp.arange(f.shape[1])
    f = jnp.where(col[None, :] < max_act_index, f, 0.0)
    return f @ W_dec + b_dec, f


if __name__ == "__main__":
    activation_dim = 256
    dict_size = 512
    k = 4                           # unused in the default forward (use_threshold=True)
    group_sizes = [96, 160, 256]    # sums to dict_size; first boundary is unaligned
    assert sum(group_sizes) == dict_size
    group_indices = [0]
    for s in group_sizes:
        group_indices.append(group_indices[-1] + s)

    key = jax.random.PRNGKey(0)
    k_param, k_x, k_be, k_bd = jax.random.split(key, 4)
    W_enc, b_enc, W_dec, b_dec, threshold = init_params(
        k_param, activation_dim, dict_size)
    # Perturb biases so the bias paths are actually exercised by the check.
    b_enc = 0.01 * jax.random.normal(k_be, (dict_size,), dtype=jnp.float32)
    b_dec = 0.01 * jax.random.normal(k_bd, (activation_dim,), dtype=jnp.float32)

    B = 16
    x = jax.random.normal(k_x, (B, activation_dim), dtype=jnp.float32)

    # (active_groups, threshold, tb, tf, output_features)
    cases = [
        (len(group_sizes), threshold, None, None, True),        # auto tiles, all groups
        (1, threshold, 8, 128, True),                           # unaligned boundary + zero tail
        (len(group_sizes), jnp.float32(0.05), 8, 128, True),    # multi-tile reduction, +ve thresh
        (len(group_sizes), threshold, None, None, False),       # reconstruction-only variant
    ]

    ok = True
    for active_groups, thr, tb, tf, out_feats in cases:
        max_act_index = group_indices[active_groups]
        out = matryoshka_batch_topk_sae_forward(
            x, W_enc, b_enc, W_dec, b_dec, thr, max_act_index,
            output_features=out_feats, tb=tb, tf=tf)
        out = jax.block_until_ready(out)
        x_hat_want, feats_want = reference_forward(
            x, W_enc, b_enc, W_dec, b_dec, thr, max_act_index)
        if out_feats:
            x_hat, feats = out
            ok &= bool(jnp.allclose(feats, feats_want, atol=1e-4, rtol=1e-4))
        else:
            x_hat = out
        ok &= bool(jnp.allclose(x_hat, x_hat_want, atol=1e-4, rtol=1e-4))
    assert ok

    # TODO(synk): the use_threshold=False batch-topk path (flatten + topk +
    # scatter across the whole batch) is not exercised by forward() and is left
    # unimplemented in-kernel.
    print("KERNEL_OK")
</pallas_src>

<mosaic_0001>
module attributes {stable_mosaic.version = 11 : i64} {
  func.func @_sae_kernel(%arg0: i32, %arg1: i32, %arg2: memref<1xf32, #tpu.memory_space<smem>>, %arg3: memref<16x256xf32, #tpu.memory_space<vmem>>, %arg4: memref<256x512xf32, #tpu.memory_space<vmem>>, %arg5: memref<1x512xf32, #tpu.memory_space<vmem>>, %arg6: memref<512x256xf32, #tpu.memory_space<vmem>>, %arg7: memref<1x256xf32, #tpu.memory_space<vmem>>, %arg8: memref<16x256xf32, #tpu.memory_space<vmem>>, %arg9: memref<16x512xf32, #tpu.memory_space<vmem>>, %arg10: memref<16x256xf32, #tpu.memory_space<vmem>>, %arg11: memref<16x256xf32, #tpu.memory_space<vmem>>) attributes {dimension_semantics = [#tpu.dimension_semantics<parallel>, #tpu.dimension_semantics<arbitrary>], iteration_bounds = array<i64: 1, 1>, scalar_prefetch = 0 : i64, scratch_operands = 2 : i64, tpu.core_type = #tpu.core_type<tc>, window_params = [{transform_indices = @transform_0, window_bounds = array<i64: 1>}, {transform_indices = @transform_1, window_bounds = array<i64: 16, 256>}, {transform_indices = @transform_2, window_bounds = array<i64: 256, 512>}, {transform_indices = @transform_3, window_bounds = array<i64: 1, 512>}, {transform_indices = @transform_4, window_bounds = array<i64: 512, 256>}, {pipeline_mode = #tpu.pipeline_mode<synchronous>, transform_indices = @transform_5, window_bounds = array<i64: 1, 256>}, {transform_indices = @transform_6, window_bounds = array<i64: 16, 256>}, {transform_indices = @transform_7, window_bounds = array<i64: 16, 512>}]} {
    %c0_i32 = arith.constant 0 : i32
    %0 = arith.cmpi eq, %arg1, %c0_i32 : i32
    %1 = arith.extui %0 : i1 to i32
    %c0_i32_0 = arith.constant 0 : i32
    %2 = arith.cmpi ne, %1, %c0_i32_0 : i32
    scf.if %2 {
      %c0_20 = arith.constant 0 : index
      %c0_21 = arith.constant 0 : index
      %27 = vector.load %arg3[%c0_20, %c0_21] : memref<16x256xf32, #tpu.memory_space<vmem>>, vector<16x256xf32>
      %c0_22 = arith.constant 0 : index
      %c0_23 = arith.constant 0 : index
      %28 = vector.load %arg7[%c0_22, %c0_23] : memref<1x256xf32, #tpu.memory_space<vmem>>, vector<1x256xf32>
      %29 = vector.broadcast %28 : vector<1x256xf32> to vector<16x256xf32>
      %30 = arith.subf %27, %29 : vector<16x256xf32>
      %c0_24 = arith.constant 0 : index
      %c0_25 = arith.constant 0 : index
      %31 = vector.load %arg10[%c0_24, %c0_25] : memref<16x256xf32, #tpu.memory_space<vmem>>, vector<16x256xf32>
      tpu.vector_store %arg10[%c0_24, %c0_25], %30 {strides = array<i32>} : memref<16x256xf32, #tpu.memory_space<vmem>>, vector<16x256xf32>,
    } else {
    }
    %c0 = arith.constant 0 : index
    %c0_1 = arith.constant 0 : index
    %3 = vector.load %arg10[%c0, %c0_1] : memref<16x256xf32, #tpu.memory_space<vmem>>, vector<16x256xf32>
    %c0_2 = arith.constant 0 : index
    %c0_3 = arith.constant 0 : index
    %4 = vector.load %arg4[%c0_2, %c0_3] : memref<256x512xf32, #tpu.memory_space<vmem>>, vector<256x512xf32>
    %cst = arith.constant dense<0.000000e+00> : vector<16x512xf32>
    %5 = tpu.matmul %3, %4, %cst {dimension_numbers = #tpu.dot_dimension_numbers<[1], [0], [0], [1], [0, 0, 1, 1], [], []>} : vector<16x256xf32>, vector<256x512xf32>, vector<16x512xf32> -> vector<16x512xf32>
    %c0_4 = arith.constant 0 : index
    %c0_5 = arith.constant 0 : index
    %6 = vector.load %arg5[%c0_4, %c0_5] : memref<1x512xf32, #tpu.memory_space<vmem>>, vector<1x512xf32>
    %7 = vector.broadcast %6 : vector<1x512xf32> to vector<16x512xf32>
    %8 = arith.addf %5, %7 : vector<16x512xf32>
    %c0_6 = arith.constant 0 : index
    %9 = memref.load %arg2[%c0_6] : memref<1xf32, #tpu.memory_space<smem>>
    %cst_7 = arith.constant 0.000000e+00 : f32
    %10 = arith.maximumf %9, %cst_7 : f32
    %11 = vector.broadcast %10 : f32 to vector<16x512xf32>
    %12 = arith.cmpf ogt, %8, %11 : vector<16x512xf32>
    %cst_8 = arith.constant 0.000000e+00 : f32
    %13 = vector.broadcast %cst_8 : f32 to vector<16x512xf32>
    %14 = arith.select %12, %8, %13 : vector<16x512xi1>, vector<16x512xf32>
    %c0_9 = arith.constant 0 : index
    %c0_10 = arith.constant 0 : index
    %15 = vector.load %arg9[%c0_9, %c0_10] : memref<16x512xf32, #tpu.memory_space<vmem>>, vector<16x512xf32>
    tpu.vector_store %arg9[%c0_9, %c0_10], %14 {strides = array<i32>} : memref<16x512xf32, #tpu.memory_space<vmem>>, vector<16x512xf32>,
    %c0_11 = arith.constant 0 : index
    %c0_12 = arith.constant 0 : index
    %16 = vector.load %arg6[%c0_11, %c0_12] : memref<512x256xf32, #tpu.memory_space<vmem>>, vector<512x256xf32>
    %cst_13 = arith.constant dense<0.000000e+00> : vector<16x256xf32>
    %17 = tpu.matmul %14, %16, %cst_13 {dimension_numbers = #tpu.dot_dimension_numbers<[1], [0], [0], [1], [0, 0, 1, 1], [], []>} : vector<16x512xf32>, vector<512x256xf32>, vector<16x256xf32> -> vector<16x256xf32>
    %c0_i32_14 = arith.constant 0 : i32
    %18 = arith.cmpi eq, %arg1, %c0_i32_14 : i32
    %19 = arith.extui %18 : i1 to i32
    %c0_i32_15 = arith.constant 0 : i32
    %20 = arith.cmpi ne, %19, %c0_i32_15 : i32
    scf.if %20 {
      %c0_20 = arith.constant 0 : index
      %c0_21 = arith.constant 0 : index
      %27 = vector.load %arg11[%c0_20, %c0_21] : memref<16x256xf32, #tpu.memory_space<vmem>>, vector<16x256xf32>
      tpu.vector_store %arg11[%c0_20, %c0_21], %17 {strides = array<i32>} : memref<16x256xf32, #tpu.memory_space<vmem>>, vector<16x256xf32>,
    } else {
    }
    %c0_i32_16 = arith.constant 0 : i32
    %21 = arith.cmpi ne, %arg1, %c0_i32_16 : i32
    %22 = arith.extui %21 : i1 to i32
    %c0_i32_17 = arith.constant 0 : i32
    %23 = arith.cmpi ne, %22, %c0_i32_17 : i32
    scf.if %23 {
      %c0_20 = arith.constant 0 : index
      %c0_21 = arith.constant 0 : index
      %27 = vector.load %arg11[%c0_20, %c0_21] : memref<16x256xf32, #tpu.memory_space<vmem>>, vector<16x256xf32>
      %28 = arith.addf %27, %17 : vector<16x256xf32>
      %c0_22 = arith.constant 0 : index
      %c0_23 = arith.constant 0 : index
      %29 = vector.load %arg11[%c0_22, %c0_23] : memref<16x256xf32, #tpu.memory_space<vmem>>, vector<16x256xf32>
      tpu.vector_store %arg11[%c0_22, %c0_23], %28 {strides = array<i32>} : memref<16x256xf32, #tpu.memory_space<vmem>>, vector<16x256xf32>,
    } else {
    }
    %c0_i32_18 = arith.constant 0 : i32
    %24 = arith.cmpi eq, %arg1, %c0_i32_18 : i32
    %25 = arith.extui %24 : i1 to i32
    %c0_i32_19 = arith.constant 0 : i32
    %26 = arith.cmpi ne, %25, %c0_i32_19 : i32
    scf.if %26 {
      %c0_20 = arith.constant 0 : index
      %c0_21 = arith.constant 0 : index
      %27 = vector.load %arg11[%c0_20, %c0_21] : memref<16x256xf32, #tpu.memory_space<vmem>>, vector<16x256xf32>
      %c0_22 = arith.constant 0 : index
      %c0_23 = arith.constant 0 : index
      %28 = vector.load %arg7[%c0_22, %c0_23] : memref<1x256xf32, #tpu.memory_space<vmem>>, vector<1x256xf32>
      %29 = vector.broadcast %28 : vector<1x256xf32> to vector<16x256xf32>
      %30 = arith.addf %27, %29 : vector<16x256xf32>
      %c0_24 = arith.constant 0 : index
      %c0_25 = arith.constant 0 : index
      %31 = vector.load %arg8[%c0_24, %c0_25] : memref<16x256xf32, #tpu.memory_space<vmem>>, vector<16x256xf32>
      tpu.vector_store %arg8[%c0_24, %c0_25], %30 {strides = array<i32>} : memref<16x256xf32, #tpu.memory_space<vmem>>, vector<16x256xf32>,
    } else {
    }
    return
  }
  func.func @transform_0(%arg0: i32, %arg1: i32) -> i32 {
    %c0_i32 = arith.constant 0 : i32
    %c0_i32_0 = arith.constant 0 : i32
    return %c0_i32 : i32
  }
  func.func @transform_1(%arg0: i32, %arg1: i32) -> (i32, i32) {
    %c0_i32 = arith.constant 0 : i32
    %c0_i32_0 = arith.constant 0 : i32
    return %arg0, %c0_i32 : i32, i32
  }
  func.func @transform_2(%arg0: i32, %arg1: i32) -> (i32, i32) {
    %c0_i32 = arith.constant 0 : i32
    %c0_i32_0 = arith.constant 0 : i32
    return %c0_i32, %arg1 : i32, i32
  }
  func.func @transform_3(%arg0: i32, %arg1: i32) -> (i32, i32) {
    %c0_i32 = arith.constant 0 : i32
    %c0_i32_0 = arith.constant 0 : i32
    return %c0_i32, %arg1 : i32, i32
  }
  func.func @transform_4(%arg0: i32, %arg1: i32) -> (i32, i32) {
    %c0_i32 = arith.constant 0 : i32
    %c0_i32_0 = arith.constant 0 : i32
    return %arg1, %c0_i32 : i32, i32
  }
  func.func @transform_5(%arg0: i32, %arg1: i32) -> (i32, i32) {
    %c0_i32 = arith.constant 0 : i32
    %c0_i32_0 = arith.constant 0 : i32
    %c0_i32_1 = arith.constant 0 : i32
    return %c0_i32, %c0_i32_0 : i32, i32
  }
  func.func @transform_6(%arg0: i32, %arg1: i32) -> (i32, i32) {
    %c0_i32 = arith.constant 0 : i32
    %c0_i32_0 = arith.constant 0 : i32
    return %arg0, %c0_i32 : i32, i32
  }
  func.func @transform_7(%arg0: i32, %arg1: i32) -> (i32, i32) {
    %c0_i32 = arith.constant 0 : i32
    return %arg0, %arg1 : i32, i32
  }
}

</mosaic_0001>

<llo_original>
// kernel: tpu_custom_call.1
$region0: #{tpu_custom_call.1}
  #allocation0 [shape = 'u32[]', space=smem, size = 0x4, offset = 0x4, fixed_abs, tag = 'smem constant byte address 0x4 - core index']
  #allocation1 [shape = 'u32[72,128]{1,0:T(1,128)}', space=vmem, size = 0x9000, scoped, tag = 'internal scratch']
  #allocation2 [shape = 'f32[16,256]{1,0:T(8,128)}', space=vmem, size = 0x4000, scoped, tag = 'scratch operand']
  #allocation3 [shape = 'f32[16,256]{1,0:T(8,128)}', space=vmem, size = 0x4000, scoped, tag = 'scratch operand']
  #allocation4 [shape = 'f32[1]{0:T(128)S(6)}', space=smem, size = 0x200, scoped, tag = 'scoped memory for tpu_custom_call.1']
  %s0 = inlined_call_operand.<no memory space> [shape: f32[1], index: 0, kind: input, shape index: {}]
  %s1 = inlined_call_operand.hbm [shape: f32[16,256], index: 1, kind: input, shape index: {}]
  %s2 = inlined_call_operand.hbm [shape: f32[256,512], index: 2, kind: input, shape index: {}]
  %s3 = inlined_call_operand.hbm [shape: f32[1,512], index: 3, kind: input, shape index: {}]
  %s4 = inlined_call_operand.hbm [shape: f32[512,256], index: 4, kind: input, shape index: {}]
  %s5 = inlined_call_operand.vmem [shape: f32[1,256], index: 5, kind: input, shape index: {}]
  %s6 = inlined_call_operand.hbm [shape: f32[16,256], index: 6, kind: output, shape index: {0}]
  %s7 = inlined_call_operand.hbm [shape: f32[16,512], index: 7, kind: output, shape index: {1}]
  %8 = xla_tuple %s6, %s7
  %s9 = sld [smem:[#allocation0]]
  $region74: #{tpu_custom_call.1} parent=0
    _
  %s11 = ssub.s32 1, %s9
  %s12 = scalar_select 0, %s11, %s9
  %13 = sst [smem:[#allocation4]] %s0
  $region1: #{tpu_custom_call.1} parent=0
    #allocation5 [shape = 'u8[16384]{0}', space=vmem, size = 0x4000, scoped, tag = 'input window, operand 1, single buffered']
    #allocation6 [shape = 's32[1]{0}', space=sflag, size = 0x4, scoped, tag = 'scoped memory for tpu_custom_call.1']
    #allocation7 [shape = 's32[1]{0}', space=sflag, size = 0x4, scoped, tag = 'scoped memory for tpu_custom_call.1']
    #allocation8 [shape = 'u8[524288]{0}', space=vmem, size = 0x80000, scoped, tag = 'input window, operand 2, single buffered']
    #allocation9 [shape = 's32[1]{0}', space=sflag, size = 0x4, scoped, tag = 'scoped memory for tpu_custom_call.1']
    #allocation10 [shape = 'u8[2048]{0}', space=vmem, size = 0x800, scoped, tag = 'input window, operand 3, single buffered']
    #allocation11 [shape = 'u8[524288]{0}', space=vmem, size = 0x80000, scoped, tag = 'input window, operand 4, single buffered']
    #allocation12 [shape = 's32[1]{0}', space=sflag, size = 0x4, scoped, tag = 'scoped memory for tpu_custom_call.1']
    #allocation13 [shape = 'u8[16384]{0}', space=vmem, size = 0x4000, scoped, tag = 'output window, operand 0, single buffered']
    #allocation14 [shape = 'u8[32768]{0}', space=vmem, size = 0x8000, scoped, tag = 'output window, operand 1, single buffered']
    #allocation15 [shape = 's32[1]{0}', space=sflag, size = 0x4, scoped, tag = 'scoped memory for tpu_custom_call.1']
    %14 = vsyncpa [#allocation6], 0
    %15 = vsyncpa [#allocation9], 0
    %16 = vsyncpa [#allocation12], 0
    %17 = vsyncpa [#allocation7], 0
    %18 = vsyncpa [#allocation15], 0
    // Predicated region
    $region2: #{tpu_custom_call.1} parent=1 // pred_check
      _
    $region3: #{tpu_custom_call.1} parent=1 // pred_check_branch
      %20 = sbr.rel (0) target = $region5
    $region4: #{tpu_custom_call.1} parent=1 // pred_region
      _
    $region5: #{tpu_custom_call.1} parent=1 // pred_fallthru
      _
    // Predicated region
    $region6: #{tpu_custom_call.1} parent=1 // pred_check
      _
    $region7: #{tpu_custom_call.1} parent=1 // pred_check_branch
      %22 = sbr.rel (0) target = $region9
    $region8: #{tpu_custom_call.1} parent=1 // pred_region
      %24 = vsyncadd [#allocation6], 0
      %s25 = sshll.u32 %s1, 4
      %s26 = int_to_ptr.hbm [resolvable:$true] %s25
      %s27 = sshll.u32 [#allocation5], 4
      %s28 = int_to_ptr.vmem [resolvable:$true] %s27
      %33 = dma.hbm_to_vmem [thread:$0]  %s26, 512, %s28, [#allocation6], 256, 256, 16
    $region9: #{tpu_custom_call.1} parent=1 // pred_fallthru
      _
    // Predicated region
    $region10: #{tpu_custom_call.1} parent=1 // pred_check
      _
    $region11: #{tpu_custom_call.1} parent=1 // pred_check_branch
      %35 = sbr.rel (0) target = $region13
    $region12: #{tpu_custom_call.1} parent=1 // pred_region
      %37 = vsyncadd [#allocation9], 0
      %s38 = sshll.u32 %s2, 4
      %s39 = int_to_ptr.hbm [resolvable:$true] %s38
      %s40 = sshll.u32 [#allocation8], 4
      %s41 = int_to_ptr.vmem [resolvable:$true] %s40
      %46 = dma.hbm_to_vmem [thread:$0]  %s39, 16384, %s41, [#allocation9], 512, 512, 32
    $region13: #{tpu_custom_call.1} parent=1 // pred_fallthru
      _
    // Predicated region
    $region14: #{tpu_custom_call.1} parent=1 // pred_check
      _
    $region15: #{tpu_custom_call.1} parent=1 // pred_check_branch
      %48 = sbr.rel (0) target = $region17
    $region16: #{tpu_custom_call.1} parent=1 // pred_region
      %50 = vsyncadd [#allocation9], 0
      %s52 = sshll.u32 %s3, 4
      %s53 = int_to_ptr.hbm [resolvable:$true] %s52
      %s54 = sshll.u32 [#allocation10], 4
      %s55 = int_to_ptr.vmem [resolvable:$true] %s54
      %57 = dma.hbm_to_vmem [thread:$0]  %s53, 64, %s55, [#allocation9]
    $region17: #{tpu_custom_call.1} parent=1 // pred_fallthru
      _
    // Predicated region
    $region18: #{tpu_custom_call.1} parent=1 // pred_check
      _
    $region19: #{tpu_custom_call.1} parent=1 // pred_check_branch
      %59 = sbr.rel (0) target = $region21
    $region20: #{tpu_custom_call.1} parent=1 // pred_region
      %61 = vsyncadd [#allocation12], 0
      %s62 = sshll.u32 %s4, 4
      %s63 = int_to_ptr.hbm [resolvable:$true] %s62
      %s64 = sshll.u32 [#allocation11], 4
      %s65 = int_to_ptr.vmem [resolvable:$true] %s64
      %70 = dma.hbm_to_vmem [thread:$0]  %s63, 16384, %s65, [#allocation12], 256, 256, 16
    $region21: #{tpu_custom_call.1} parent=1 // pred_fallthru
      _
    // Predicated region
    $region22: #{tpu_custom_call.1} parent=1 // pred_check
      _
    $region23: #{tpu_custom_call.1} parent=1 // pred_check_branch
      %72 = sbr.rel (0) target = $region25
    $region24: #{tpu_custom_call.1} parent=1 // pred_region
      _
    $region25: #{tpu_custom_call.1} parent=1 // pred_fallthru
      _
    // Predicated region
    $region26: #{tpu_custom_call.1} parent=1 // pred_check
      _
    $region27: #{tpu_custom_call.1} parent=1 // pred_check_branch
      %74 = sbr.rel (0) target = $region29
    $region28: #{tpu_custom_call.1} parent=1 // pred_region
      %76 = dma.done [#allocation6], 512
    $region29: #{tpu_custom_call.1} parent=1 // pred_fallthru
      _
    // Predicated region
    $region30: #{tpu_custom_call.1} parent=1 // pred_check
      _
    $region31: #{tpu_custom_call.1} parent=1 // pred_check_branch
      %78 = sbr.rel (0) target = $region33
    $region32: #{tpu_custom_call.1} parent=1 // pred_region
      %80 = dma.done [#allocation9], 16384
    $region33: #{tpu_custom_call.1} parent=1 // pred_fallthru
      _
    // Predicated region
    $region34: #{tpu_custom_call.1} parent=1 // pred_check
      _
    $region35: #{tpu_custom_call.1} parent=1 // pred_check_branch
      %82 = sbr.rel (0) target = $region37
    $region36: #{tpu_custom_call.1} parent=1 // pred_region
      %84 = dma.done [#allocation9], 64
    $region37: #{tpu_custom_call.1} parent=1 // pred_fallthru
      _
    // Predicated region
    $region38: #{tpu_custom_call.1} parent=1 // pred_check
      _
    $region39: #{tpu_custom_call.1} parent=1 // pred_check_branch
      %86 = sbr.rel (0) target = $region41
    $region40: #{tpu_custom_call.1} parent=1 // pred_region
      %88 = dma.done [#allocation12], 16384
    $region41: #{tpu_custom_call.1} parent=1 // pred_fallthru
      _
    %p89 = scmp.eq.s32.totalorder 0, 0
    // Predicated region
    $region42: #{tpu_custom_call.1} parent=1 // pred_check
      %p90 = pneg %p89
    $region43: #{tpu_custom_call.1} parent=1 // pred_check_branch
      %92 = sbr.rel (%p90) target = $region45
    $region44: #{tpu_custom_call.1} parent=1 // pred_region
      %v93 = vld [vmem:[#allocation5] sm:$0xff]
      %v94 = vld [vmem:[#allocation5 + $0x8] sm:$0xff]
      %v95 = vld [vmem:[#allocation5 + $0x10] sm:$0xff]
      %v96 = vld [vmem:[#allocation5 + $0x18] sm:$0xff]
      %v97 = vld [vmem:[%s5] sm:$0x3]
      %v99 = vperm.slane %v97, 0
      %v100 = vperm.slane %v97, 1
      %v103 = vsub.f32 %v93, %v99
      %v104 = vsub.f32 %v94, %v100
      %v105 = vsub.f32 %v95, %v99
      %v106 = vsub.f32 %v96, %v100
      %107 = vst [vmem:[#allocation2] sm:$0xff] %v103
      %108 = vst [vmem:[#allocation2 + $0x8] sm:$0xff] %v104
      %109 = vst [vmem:[#allocation2 + $0x10] sm:$0xff] %v105
      %110 = vst [vmem:[#allocation2 + $0x18] sm:$0xff] %v106
    $region45: #{tpu_custom_call.1} parent=1 // pred_fallthru
      _
    %v111 = vld [vmem:[#allocation2] sm:$0xff]
    %v112 = vld [vmem:[#allocation2 + $0x8] sm:$0xff]
    %v113 = vld [vmem:[#allocation2 + $0x10] sm:$0xff]
    %v114 = vld [vmem:[#allocation2 + $0x18] sm:$0xff]
    %v115 = vld [vmem:[#allocation8] sm:$0xff]
    %v116 = vld [vmem:[#allocation8 + $0x8] sm:$0xff]
    %v117 = vld [vmem:[#allocation8 + $0x10] sm:$0xff]
    %v118 = vld [vmem:[#allocation8 + $0x18] sm:$0xff]
    %v119 = vld [vmem:[#allocation8 + $0x20] sm:$0xff]
    %v120 = vld [vmem:[#allocation8 + $0x28] sm:$0xff]
    %v121 = vld [vmem:[#allocation8 + $0x30] sm:$0xff]
    %v122 = vld [vmem:[#allocation8 + $0x38] sm:$0xff]
    %v123 = vld [vmem:[#allocation8 + $0x40] sm:$0xff]
    %v124 = vld [vmem:[#allocation8 + $0x48] sm:$0xff]
    %v125 = vld [vmem:[#allocation8 + $0x50] sm:$0xff]
    %v126 = vld [vmem:[#allocation8 + $0x58] sm:$0xff]
    %v127 = vld [vmem:[#allocation8 + $0x60] sm:$0xff]
    %v128 = vld [vmem:[#allocation8 + $0x68] sm:$0xff]
    %v129 = vld [vmem:[#allocation8 + $0x70] sm:$0xff]
    %v130 = vld [vmem:[#allocation8 + $0x78] sm:$0xff]
    %v131 = vld [vmem:[#allocation8 + $0x80] sm:$0xff]
    %v132 = vld [vmem:[#allocation8 + $0x88] sm:$0xff]
    %v133 = vld [vmem:[#allocation8 + $0x90] sm:$0xff]
    %v134 = vld [vmem:[#allocation8 + $0x98] sm:$0xff]
    %v135 = vld [vmem:[#allocation8 + $0xa0] sm:$0xff]
    %v136 = vld [vmem:[#allocation8 + $0xa8] sm:$0xff]
    %v137 = vld [vmem:[#allocation8 + $0xb0] sm:$0xff]
    %v138 = vld [vmem:[#allocation8 + $0xb8] sm:$0xff]
    %v139 = vld [vmem:[#allocation8 + $0xc0] sm:$0xff]
    %v140 = vld [vmem:[#allocation8 + $0xc8] sm:$0xff]
    %v141 = vld [vmem:[#allocation8 + $0xd0] sm:$0xff]
    %v142 = vld [vmem:[#allocation8 + $0xd8] sm:$0xff]
    %v143 = vld [vmem:[#allocation8 + $0xe0] sm:$0xff]
    %v144 = vld [vmem:[#allocation8 + $0xe8] sm:$0xff]
    %v145 = vld [vmem:[#allocation8 + $0xf0] sm:$0xff]
    %v146 = vld [vmem:[#allocation8 + $0xf8] sm:$0xff]
    %v147 = vld [vmem:[#allocation8 + $0x100] sm:$0xff]
    %v148 = vld [vmem:[#allocation8 + $0x108] sm:$0xff]
    %v149 = vld [vmem:[#allocation8 + $0x110] sm:$0xff]
    %v150 = vld [vmem:[#allocation8 + $0x118] sm:$0xff]
    %v151 = vld [vmem:[#allocation8 + $0x120] sm:$0xff]
    %v152 = vld [vmem:[#allocation8 + $0x128] sm:$0xff]
    %v153 = vld [vmem:[#allocation8 + $0x130] sm:$0xff]
    %v154 = vld [vmem:[#allocation8 + $0x138] sm:$0xff]
    %v155 = vld [vmem:[#allocation8 + $0x140] sm:$0xff]
    %v156 = vld [vmem:[#allocation8 + $0x148] sm:$0xff]
    %v157 = vld [vmem:[#allocation8 + $0x150] sm:$0xff]
    %v158 = vld [vmem:[#allocation8 + $0x158] sm:$0xff]
    %v159 = vld [vmem:[#allocation8 + $0x160] sm:$0xff]
    %v160 = vld [vmem:[#allocation8 + $0x168] sm:$0xff]
    %v161 = vld [vmem:[#allocation8 + $0x170] sm:$0xff]
    %v162 = vld [vmem:[#allocation8 + $0x178] sm:$0xff]
    %v163 = vld [vmem:[#allocation8 + $0x180] sm:$0xff]
    %v164 = vld [vmem:[#allocation8 + $0x188] sm:$0xff]
    %v165 = vld [vmem:[#allocation8 + $0x190] sm:$0xff]
    %v166 = vld [vmem:[#allocation8 + $0x198] sm:$0xff]
    %v167 = vld [vmem:[#allocation8 + $0x1a0] sm:$0xff]
    %v168 = vld [vmem:[#allocation8 + $0x1a8] sm:$0xff]
    %v169 = vld [vmem:[#allocation8 + $0x1b0] sm:$0xff]
    %v170 = vld [vmem:[#allocation8 + $0x1b8] sm:$0xff]
    %v171 = vld [vmem:[#allocation8 + $0x1c0] sm:$0xff]
    %v172 = vld [vmem:[#allocation8 + $0x1c8] sm:$0xff]
    %v173 = vld [vmem:[#allocation8 + $0x1d0] sm:$0xff]
    %v174 = vld [vmem:[#allocation8 + $0x1d8] sm:$0xff]
    %v175 = vld [vmem:[#allocation8 + $0x1e0] sm:$0xff]
    %v176 = vld [vmem:[#allocation8 + $0x1e8] sm:$0xff]
    %v177 = vld [vmem:[#allocation8 + $0x1f0] sm:$0xff]
    %v178 = vld [vmem:[#allocation8 + $0x1f8] sm:$0xff]
    %v179 = vld [vmem:[#allocation8 + $0x200] sm:$0xff]
    %v180 = vld [vmem:[#allocation8 + $0x208] sm:$0xff]
    %v181 = vld [vmem:[#allocation8 + $0x210] sm:$0xff]
    %v182 = vld [vmem:[#allocation8 + $0x218] sm:$0xff]
    %v183 = vld [vmem:[#allocation8 + $0x220] sm:$0xff]
    %v184 = vld [vmem:[#allocation8 + $0x228] sm:$0xff]
    %v185 = vld [vmem:[#allocation8 + $0x230] sm:$0xff]
    %v186 = vld [vmem:[#allocation8 + $0x238] sm:$0xff]
    %v187 = vld [vmem:[#allocation8 + $0x240] sm:$0xff]
    %v188 = vld [vmem:[#allocation8 + $0x248] sm:$0xff]
    %v189 = vld [vmem:[#allocation8 + $0x250] sm:$0xff]
    %v190 = vld [vmem:[#allocation8 + $0x258] sm:$0xff]
    %v191 = vld [vmem:[#allocation8 + $0x260] sm:$0xff]
    %v192 = vld [vmem:[#allocation8 + $0x268] sm:$0xff]
    %v193 = vld [vmem:[#allocation8 + $0x270] sm:$0xff]
    %v194 = vld [vmem:[#allocation8 + $0x278] sm:$0xff]
    %v195 = vld [vmem:[#allocation8 + $0x280] sm:$0xff]
    %v196 = vld [vmem:[#allocation8 + $0x288] sm:$0xff]
    %v197 = vld [vmem:[#allocation8 + $0x290] sm:$0xff]
    %v198 = vld [vmem:[#allocation8 + $0x298] sm:$0xff]
    %v199 = vld [vmem:[#allocation8 + $0x2a0] sm:$0xff]
    %v200 = vld [vmem:[#allocation8 + $0x2a8] sm:$0xff]
    %v201 = vld [vmem:[#allocation8 + $0x2b0] sm:$0xff]
    %v202 = vld [vmem:[#allocation8 + $0x2b8] sm:$0xff]
    %v203 = vld [vmem:[#allocation8 + $0x2c0] sm:$0xff]
    %v204 = vld [vmem:[#allocation8 + $0x2c8] sm:$0xff]
    %v205 = vld [vmem:[#allocation8 + $0x2d0] sm:$0xff]
    %v206 = vld [vmem:[#allocation8 + $0x2d8] sm:$0xff]
    %v207 = vld [vmem:[#allocation8 + $0x2e0] sm:$0xff]
    %v208 = vld [vmem:[#allocation8 + $0x2e8] sm:$0xff]
    %v209 = vld [vmem:[#allocation8 + $0x2f0] sm:$0xff]
    %v210 = vld [vmem:[#allocation8 + $0x2f8] sm:$0xff]
    %v211 = vld [vmem:[#allocation8 + $0x300] sm:$0xff]
    %v212 = vld [vmem:[#allocation8 + $0x308] sm:$0xff]
    %v213 = vld [vmem:[#allocation8 + $0x310] sm:$0xff]
    %v214 = vld [vmem:[#allocation8 + $0x318] sm:$0xff]
    %v215 = vld [vmem:[#allocation8 + $0x320] sm:$0xff]
    %v216 = vld [vmem:[#allocation8 + $0x328] sm:$0xff]
    %v217 = vld [vmem:[#allocation8 + $0x330] sm:$0xff]
    %v218 = vld [vmem:[#allocation8 + $0x338] sm:$0xff]
    %v219 = vld [vmem:[#allocation8 + $0x340] sm:$0xff]
    %v220 = vld [vmem:[#allocation8 + $0x348] sm:$0xff]
    %v221 = vld [vmem:[#allocation8 + $0x350] sm:$0xff]
    %v222 = vld [vmem:[#allocation8 + $0x358] sm:$0xff]
    %v223 = vld [vmem:[#allocation8 + $0x360] sm:$0xff]
    %v224 = vld [vmem:[#allocation8 + $0x368] sm:$0xff]
    %v225 = vld [vmem:[#allocation8 + $0x370] sm:$0xff]
    %v226 = vld [vmem:[#allocation8 + $0x378] sm:$0xff]
    %v227 = vld [vmem:[#allocation8 + $0x380] sm:$0xff]
    %v228 = vld [vmem:[#allocation8 + $0x388] sm:$0xff]
    %v229 = vld [vmem:[#allocation8 + $0x390] sm:$0xff]
    %v230 = vld [vmem:[#allocation8 + $0x398] sm:$0xff]
    %v231 = vld [vmem:[#allocation8 + $0x3a0] sm:$0xff]
    %v232 = vld [vmem:[#allocation8 + $0x3a8] sm:$0xff]
    %v233 = vld [vmem:[#allocation8 + $0x3b0] sm:$0xff]
    %v234 = vld [vmem:[#allocation8 + $0x3b8] sm:$0xff]
    %v235 = vld [vmem:[#allocation8 + $0x3c0] sm:$0xff]
    %v236 = vld [vmem:[#allocation8 + $0x3c8] sm:$0xff]
    %v237 = vld [vmem:[#allocation8 + $0x3d0] sm:$0xff]
    %v238 = vld [vmem:[#allocation8 + $0x3d8] sm:$0xff]
    %v239 = vld [vmem:[#allocation8 + $0x3e0] sm:$0xff]
    %v240 = vld [vmem:[#allocation8 + $0x3e8] sm:$0xff]
    %v241 = vld [vmem:[#allocation8 + $0x3f0] sm:$0xff]
    %v242 = vld [vmem:[#allocation8 + $0x3f8] sm:$0xff]
    %v243 = vld [vmem:[#allocation10] sm:$0xf]
    %v245 = vperm.slane %v243, 0
    %v246 = vperm.slane %v243, 1
    %v247 = vperm.slane %v243, 2
    %v248 = vperm.slane %v243, 3
    %253 = vmatpush.msra.mxu0 %v175
    %254 = vmatpush.msra.mxu0 %v171
    %255 = vmatpush.msra.mxu0 %v167
    %256 = vmatpush.msra.mxu0 %v163
    %257 = vmatpush.msra.mxu0 %v159
    %258 = vmatpush.msra.mxu0 %v155
    %259 = vmatpush.msra.mxu0 %v151
    %260 = vmatpush.msra.mxu0 %v147
    %261 = vmatpush.msra.mxu0 %v143
    %262 = vmatpush.msra.mxu0 %v139
    %263 = vmatpush.msra.mxu0 %v135
    %264 = vmatpush.msra.mxu0 %v131
    %265 = vmatpush.msra.mxu0 %v127
    %266 = vmatpush.msra.mxu0 %v123
    %267 = vmatpush.msra.mxu0 %v119
    %268 = vmatpush.msra.mxu0 %v115
    %269 = vmatmul.f32.gmra.mxu0 %v111
    %v270 = vpop.f32.mrf.mxu0
    %v271 = vadd.f32 %v245, %v270
    %272 = vmatmul.f32.gmra.mxu0 %v113
    %v273 = vpop.f32.mrf.mxu0
    %v274 = vadd.f32 %v245, %v273
    %275 = vdwg.mxu0
    %276 = vmatpush.msra.mxu0 %v239
    %277 = vmatpush.msra.mxu0 %v235
    %278 = vmatpush.msra.mxu0 %v231
    %279 = vmatpush.msra.mxu0 %v227
    %280 = vmatpush.msra.mxu0 %v223
    %281 = vmatpush.msra.mxu0 %v219
    %282 = vmatpush.msra.mxu0 %v215
    %283 = vmatpush.msra.mxu0 %v211
    %284 = vmatpush.msra.mxu0 %v207
    %285 = vmatpush.msra.mxu0 %v203
    %286 = vmatpush.msra.mxu0 %v199
    %287 = vmatpush.msra.mxu0 %v195
    %288 = vmatpush.msra.mxu0 %v191
    %289 = vmatpush.msra.mxu0 %v187
    %290 = vmatpush.msra.mxu0 %v183
    %291 = vmatpush.msra.mxu0 %v179
    %292 = vmatmul.f32.gmra.mxu0 %v112
    %v293 = vpop.f32.mrf.mxu0
    %v294 = vadd.f32 %v271, %v293
    %295 = vmatmul.f32.gmra.mxu0 %v114
    %v296 = vpop.f32.mrf.mxu0
    %v297 = vadd.f32 %v274, %v296
    %298 = vdwg.mxu0
    %299 = vmatpush.msra.mxu0 %v176
    %300 = vmatpush.msra.mxu0 %v172
    %301 = vmatpush.msra.mxu0 %v168
    %302 = vmatpush.msra.mxu0 %v164
    %303 = vmatpush.msra.mxu0 %v160
    %304 = vmatpush.msra.mxu0 %v156
    %305 = vmatpush.msra.mxu0 %v152
    %306 = vmatpush.msra.mxu0 %v148
    %307 = vmatpush.msra.mxu0 %v144
    %308 = vmatpush.msra.mxu0 %v140
    %309 = vmatpush.msra.mxu0 %v136
    %310 = vmatpush.msra.mxu0 %v132
    %311 = vmatpush.msra.mxu0 %v128
    %312 = vmatpush.msra.mxu0 %v124
    %313 = vmatpush.msra.mxu0 %v120
    %314 = vmatpush.msra.mxu0 %v116
    %315 = vmatmul.f32.gmra.mxu0 %v111
    %v316 = vpop.f32.mrf.mxu0
    %v317 = vadd.f32 %v246, %v316
    %318 = vmatmul.f32.gmra.mxu0 %v113
    %v319 = vpop.f32.mrf.mxu0
    %v320 = vadd.f32 %v246, %v319
    %321 = vdwg.mxu0
    %322 = vmatpush.msra.mxu0 %v240
    %323 = vmatpush.msra.mxu0 %v236
    %324 = vmatpush.msra.mxu0 %v232
    %325 = vmatpush.msra.mxu0 %v228
    %326 = vmatpush.msra.mxu0 %v224
    %327 = vmatpush.msra.mxu0 %v220
    %328 = vmatpush.msra.mxu0 %v216
    %329 = vmatpush.msra.mxu0 %v212
    %330 = vmatpush.msra.mxu0 %v208
    %331 = vmatpush.msra.mxu0 %v204
    %332 = vmatpush.msra.mxu0 %v200
    %333 = vmatpush.msra.mxu0 %v196
    %334 = vmatpush.msra.mxu0 %v192
    %335 = vmatpush.msra.mxu0 %v188
    %336 = vmatpush.msra.mxu0 %v184
    %337 = vmatpush.msra.mxu0 %v180
    %338 = vmatmul.f32.gmra.mxu0 %v112
    %v339 = vpop.f32.mrf.mxu0
    %v340 = vadd.f32 %v317, %v339
    %341 = vmatmul.f32.gmra.mxu0 %v114
    %v342 = vpop.f32.mrf.mxu0
    %v343 = vadd.f32 %v320, %v342
    %344 = vdwg.mxu0
    %345 = vmatpush.msra.mxu0 %v177
    %346 = vmatpush.msra.mxu0 %v173
    %347 = vmatpush.msra.mxu0 %v169
    %348 = vmatpush.msra.mxu0 %v165
    %349 = vmatpush.msra.mxu0 %v161
    %350 = vmatpush.msra.mxu0 %v157
    %351 = vmatpush.msra.mxu0 %v153
    %352 = vmatpush.msra.mxu0 %v149
    %353 = vmatpush.msra.mxu0 %v145
    %354 = vmatpush.msra.mxu0 %v141
    %355 = vmatpush.msra.mxu0 %v137
    %356 = vmatpush.msra.mxu0 %v133
    %357 = vmatpush.msra.mxu0 %v129
    %358 = vmatpush.msra.mxu0 %v125
    %359 = vmatpush.msra.mxu0 %v121
    %360 = vmatpush.msra.mxu0 %v117
    %361 = vmatmul.f32.gmra.mxu0 %v111
    %v362 = vpop.f32.mrf.mxu0
    %v363 = vadd.f32 %v247, %v362
    %364 = vmatmul.f32.gmra.mxu0 %v113
    %v365 = vpop.f32.mrf.mxu0
    %v366 = vadd.f32 %v247, %v365
    %367 = vdwg.mxu0
    %368 = vmatpush.msra.mxu0 %v241
    %369 = vmatpush.msra.mxu0 %v237
    %370 = vmatpush.msra.mxu0 %v233
    %371 = vmatpush.msra.mxu0 %v229
    %372 = vmatpush.msra.mxu0 %v225
    %373 = vmatpush.msra.mxu0 %v221
    %374 = vmatpush.msra.mxu0 %v217
    %375 = vmatpush.msra.mxu0 %v213
    %376 = vmatpush.msra.mxu0 %v209
    %377 = vmatpush.msra.mxu0 %v205
    %378 = vmatpush.msra.mxu0 %v201
    %379 = vmatpush.msra.mxu0 %v197
    %380 = vmatpush.msra.mxu0 %v193
    %381 = vmatpush.msra.mxu0 %v189
    %382 = vmatpush.msra.mxu0 %v185
    %383 = vmatpush.msra.mxu0 %v181
    %384 = vmatmul.f32.gmra.mxu0 %v112
    %v385 = vpop.f32.mrf.mxu0
    %v386 = vadd.f32 %v363, %v385
    %387 = vmatmul.f32.gmra.mxu0 %v114
    %v388 = vpop.f32.mrf.mxu0
    %v389 = vadd.f32 %v366, %v388
    %390 = vdwg.mxu0
    %391 = vmatpush.msra.mxu0 %v178
    %392 = vmatpush.msra.mxu0 %v174
    %393 = vmatpush.msra.mxu0 %v170
    %394 = vmatpush.msra.mxu0 %v166
    %395 = vmatpush.msra.mxu0 %v162
    %396 = vmatpush.msra.mxu0 %v158
    %397 = vmatpush.msra.mxu0 %v154
    %398 = vmatpush.msra.mxu0 %v150
    %399 = vmatpush.msra.mxu0 %v146
    %400 = vmatpush.msra.mxu0 %v142
    %401 = vmatpush.msra.mxu0 %v138
    %402 = vmatpush.msra.mxu0 %v134
    %403 = vmatpush.msra.mxu0 %v130
    %404 = vmatpush.msra.mxu0 %v126
    %405 = vmatpush.msra.mxu0 %v122
    %406 = vmatpush.msra.mxu0 %v118
    %407 = vmatmul.f32.gmra.mxu0 %v111
    %v408 = vpop.f32.mrf.mxu0
    %v409 = vadd.f32 %v248, %v408
    %410 = vmatmul.f32.gmra.mxu0 %v113
    %v411 = vpop.f32.mrf.mxu0
    %v412 = vadd.f32 %v248, %v411
    %413 = vdwg.mxu0
    %414 = vmatpush.msra.mxu0 %v242
    %415 = vmatpush.msra.mxu0 %v238
    %416 = vmatpush.msra.mxu0 %v234
    %417 = vmatpush.msra.mxu0 %v230
    %418 = vmatpush.msra.mxu0 %v226
    %419 = vmatpush.msra.mxu0 %v222
    %420 = vmatpush.msra.mxu0 %v218
    %421 = vmatpush.msra.mxu0 %v214
    %422 = vmatpush.msra.mxu0 %v210
    %423 = vmatpush.msra.mxu0 %v206
    %424 = vmatpush.msra.mxu0 %v202
    %425 = vmatpush.msra.mxu0 %v198
    %426 = vmatpush.msra.mxu0 %v194
    %427 = vmatpush.msra.mxu0 %v190
    %428 = vmatpush.msra.mxu0 %v186
    %429 = vmatpush.msra.mxu0 %v182
    %430 = vmatmul.f32.gmra.mxu0 %v112
    %v431 = vpop.f32.mrf.mxu0
    %v432 = vadd.f32 %v409, %v431
    %433 = vmatmul.f32.gmra.mxu0 %v114
    %v434 = vpop.f32.mrf.mxu0
    %v435 = vadd.f32 %v412, %v434
    %436 = vdwg.mxu0
    %s437 = sld [smem:[#allocation4]]
    %s438 = smax.f32 %s437, 0.0
    %v439 = vstv %s438
    %vm440 = vcmp.gt.f32.partialorder %v294, %v439
    %vm441 = vcmp.gt.f32.partialorder %v340, %v439
    %vm442 = vcmp.gt.f32.partialorder %v386, %v439
    %vm443 = vcmp.gt.f32.partialorder %v432, %v439
    %vm444 = vcmp.gt.f32.partialorder %v297, %v439
    %vm445 = vcmp.gt.f32.partialorder %v343, %v439
    %vm446 = vcmp.gt.f32.partialorder %v389, %v439
    %vm447 = vcmp.gt.f32.partialorder %v435, %v439
    %v448 = vsel %vm440, %v294, 0.0
    %v449 = vsel %vm441, %v340, 0.0
    %v450 = vsel %vm442, %v386, 0.0
    %v451 = vsel %vm443, %v432, 0.0
    %v452 = vsel %vm444, %v297, 0.0
    %v453 = vsel %vm445, %v343, 0.0
    %v454 = vsel %vm446, %v389, 0.0
    %v455 = vsel %vm447, %v435, 0.0
    %456 = vst [vmem:[#allocation14] sm:$0xff] %v448
    %457 = vst [vmem:[#allocation14 + $0x8] sm:$0xff] %v449
    %458 = vst [vmem:[#allocation14 + $0x10] sm:$0xff] %v450
    %459 = vst [vmem:[#allocation14 + $0x18] sm:$0xff] %v451
    %460 = vst [vmem:[#allocation14 + $0x20] sm:$0xff] %v452
    %461 = vst [vmem:[#allocation14 + $0x28] sm:$0xff] %v453
    %462 = vst [vmem:[#allocation14 + $0x30] sm:$0xff] %v454
    %463 = vst [vmem:[#allocation14 + $0x38] sm:$0xff] %v455
    %v464 = vld [vmem:[#allocation11] sm:$0xff]
    %v465 = vld [vmem:[#allocation11 + $0x8] sm:$0xff]
    %v466 = vld [vmem:[#allocation11 + $0x10] sm:$0xff]
    %v467 = vld [vmem:[#allocation11 + $0x18] sm:$0xff]
    %v468 = vld [vmem:[#allocation11 + $0x20] sm:$0xff]
    %v469 = vld [vmem:[#allocation11 + $0x28] sm:$0xff]
    %v470 = vld [vmem:[#allocation11 + $0x30] sm:$0xff]
    %v471 = vld [vmem:[#allocation11 + $0x38] sm:$0xff]
    %v472 = vld [vmem:[#allocation11 + $0x40] sm:$0xff]
    %v473 = vld [vmem:[#allocation11 + $0x48] sm:$0xff]
    %v474 = vld [vmem:[#allocation11 + $0x50] sm:$0xff]
    %v475 = vld [vmem:[#allocation11 + $0x58] sm:$0xff]
    %v476 = vld [vmem:[#allocation11 + $0x60] sm:$0xff]
    %v477 = vld [vmem:[#allocation11 + $0x68] sm:$0xff]
    %v478 = vld [vmem:[#allocation11 + $0x70] sm:$0xff]
    %v479 = vld [vmem:[#allocation11 + $0x78] sm:$0xff]
    %v480 = vld [vmem:[#allocation11 + $0x80] sm:$0xff]
    %v481 = vld [vmem:[#allocation11 + $0x88] sm:$0xff]
    %v482 = vld [vmem:[#allocation11 + $0x90] sm:$0xff]
    %v483 = vld [vmem:[#allocation11 + $0x98] sm:$0xff]
    %v484 = vld [vmem:[#allocation11 + $0xa0] sm:$0xff]
    %v485 = vld [vmem:[#allocation11 + $0xa8] sm:$0xff]
    %v486 = vld [vmem:[#allocation11 + $0xb0] sm:$0xff]
    %v487 = vld [vmem:[#allocation11 + $0xb8] sm:$0xff]
    %v488 = vld [vmem:[#allocation11 + $0xc0] sm:$0xff]
    %v489 = vld [vmem:[#allocation11 + $0xc8] sm:$0xff]
    %v490 = vld [vmem:[#allocation11 + $0xd0] sm:$0xff]
    %v491 = vld [vmem:[#allocation11 + $0xd8] sm:$0xff]
    %v492 = vld [vmem:[#allocation11 + $0xe0] sm:$0xff]
    %v493 = vld [vmem:[#allocation11 + $0xe8] sm:$0xff]
    %v494 = vld [vmem:[#allocation11 + $0xf0] sm:$0xff]
    %v495 = vld [vmem:[#allocation11 + $0xf8] sm:$0xff]
    %v496 = vld [vmem:[#allocation11 + $0x100] sm:$0xff]
    %v497 = vld [vmem:[#allocation11 + $0x108] sm:$0xff]
    %v498 = vld [vmem:[#allocation11 + $0x110] sm:$0xff]
    %v499 = vld [vmem:[#allocation11 + $0x118] sm:$0xff]
    %v500 = vld [vmem:[#allocation11 + $0x120] sm:$0xff]
    %v501 = vld [vmem:[#allocation11 + $0x128] sm:$0xff]
    %v502 = vld [vmem:[#allocation11 + $0x130] sm:$0xff]
    %v503 = vld [vmem:[#allocation11 + $0x138] sm:$0xff]
    %v504 = vld [vmem:[#allocation11 + $0x140] sm:$0xff]
    %v505 = vld [vmem:[#allocation11 + $0x148] sm:$0xff]
    %v506 = vld [vmem:[#allocation11 + $0x150] sm:$0xff]
    %v507 = vld [vmem:[#allocation11 + $0x158] sm:$0xff]
    %v508 = vld [vmem:[#allocation11 + $0x160] sm:$0xff]
    %v509 = vld [vmem:[#allocation11 + $0x168] sm:$0xff]
    %v510 = vld [vmem:[#allocation11 + $0x170] sm:$0xff]
    %v511 = vld [vmem:[#allocation11 + $0x178] sm:$0xff]
    %v512 = vld [vmem:[#allocation11 + $0x180] sm:$0xff]
    %v513 = vld [vmem:[#allocation11 + $0x188] sm:$0xff]
    %v514 = vld [vmem:[#allocation11 + $0x190] sm:$0xff]
    %v515 = vld [vmem:[#allocation11 + $0x198] sm:$0xff]
    %v516 = vld [vmem:[#allocation11 + $0x1a0] sm:$0xff]
    %v517 = vld [vmem:[#allocation11 + $0x1a8] sm:$0xff]
    %v518 = vld [vmem:[#allocation11 + $0x1b0] sm:$0xff]
    %v519 = vld [vmem:[#allocation11 + $0x1b8] sm:$0xff]
    %v520 = vld [vmem:[#allocation11 + $0x1c0] sm:$0xff]
    %v521 = vld [vmem:[#allocation11 + $0x1c8] sm:$0xff]
    %v522 = vld [vmem:[#allocation11 + $0x1d0] sm:$0xff]
    %v523 = vld [vmem:[#allocation11 + $0x1d8] sm:$0xff]
    %v524 = vld [vmem:[#allocation11 + $0x1e0] sm:$0xff]
    %v525 = vld [vmem:[#allocation11 + $0x1e8] sm:$0xff]
    %v526 = vld [vmem:[#allocation11 + $0x1f0] sm:$0xff]
    %v527 = vld [vmem:[#allocation11 + $0x1f8] sm:$0xff]
    %v528 = vld [vmem:[#allocation11 + $0x200] sm:$0xff]
    %v529 = vld [vmem:[#allocation11 + $0x208] sm:$0xff]
    %v530 = vld [vmem:[#allocation11 + $0x210] sm:$0xff]
    %v531 = vld [vmem:[#allocation11 + $0x218] sm:$0xff]
    %v532 = vld [vmem:[#allocation11 + $0x220] sm:$0xff]
    %v533 = vld [vmem:[#allocation11 + $0x228] sm:$0xff]
    %v534 = vld [vmem:[#allocation11 + $0x230] sm:$0xff]
    %v535 = vld [vmem:[#allocation11 + $0x238] sm:$0xff]
    %v536 = vld [vmem:[#allocation11 + $0x240] sm:$0xff]
    %v537 = vld [vmem:[#allocation11 + $0x248] sm:$0xff]
    %v538 = vld [vmem:[#allocation11 + $0x250] sm:$0xff]
    %v539 = vld [vmem:[#allocation11 + $0x258] sm:$0xff]
    %v540 = vld [vmem:[#allocation11 + $0x260] sm:$0xff]
    %v541 = vld [vmem:[#allocation11 + $0x268] sm:$0xff]
    %v542 = vld [vmem:[#allocation11 + $0x270] sm:$0xff]
    %v543 = vld [vmem:[#allocation11 + $0x278] sm:$0xff]
    %v544 = vld [vmem:[#allocation11 + $0x280] sm:$0xff]
    %v545 = vld [vmem:[#allocation11 + $0x288] sm:$0xff]
    %v546 = vld [vmem:[#allocation11 + $0x290] sm:$0xff]
    %v547 = vld [vmem:[#allocation11 + $0x298] sm:$0xff]
    %v548 = vld [vmem:[#allocation11 + $0x2a0] sm:$0xff]
    %v549 = vld [vmem:[#allocation11 + $0x2a8] sm:$0xff]
    %v550 = vld [vmem:[#allocation11 + $0x2b0] sm:$0xff]
    %v551 = vld [vmem:[#allocation11 + $0x2b8] sm:$0xff]
    %v552 = vld [vmem:[#allocation11 + $0x2c0] sm:$0xff]
    %v553 = vld [vmem:[#allocation11 + $0x2c8] sm:$0xff]
    %v554 = vld [vmem:[#allocation11 + $0x2d0] sm:$0xff]
    %v555 = vld [vmem:[#allocation11 + $0x2d8] sm:$0xff]
    %v556 = vld [vmem:[#allocation11 + $0x2e0] sm:$0xff]
    %v557 = vld [vmem:[#allocation11 + $0x2e8] sm:$0xff]
    %v558 = vld [vmem:[#allocation11 + $0x2f0] sm:$0xff]
    %v559 = vld [vmem:[#allocation11 + $0x2f8] sm:$0xff]
    %v560 = vld [vmem:[#allocation11 + $0x300] sm:$0xff]
    %v561 = vld [vmem:[#allocation11 + $0x308] sm:$0xff]
    %v562 = vld [vmem:[#allocation11 + $0x310] sm:$0xff]
    %v563 = vld [vmem:[#allocation11 + $0x318] sm:$0xff]
    %v564 = vld [vmem:[#allocation11 + $0x320] sm:$0xff]
    %v565 = vld [vmem:[#allocation11 + $0x328] sm:$0xff]
    %v566 = vld [vmem:[#allocation11 + $0x330] sm:$0xff]
    %v567 = vld [vmem:[#allocation11 + $0x338] sm:$0xff]
    %v568 = vld [vmem:[#allocation11 + $0x340] sm:$0xff]
    %v569 = vld [vmem:[#allocation11 + $0x348] sm:$0xff]
    %v570 = vld [vmem:[#allocation11 + $0x350] sm:$0xff]
    %v571 = vld [vmem:[#allocation11 + $0x358] sm:$0xff]
    %v572 = vld [vmem:[#allocation11 + $0x360] sm:$0xff]
    %v573 = vld [vmem:[#allocation11 + $0x368] sm:$0xff]
    %v574 = vld [vmem:[#allocation11 + $0x370] sm:$0xff]
    %v575 = vld [vmem:[#allocation11 + $0x378] sm:$0xff]
    %v576 = vld [vmem:[#allocation11 + $0x380] sm:$0xff]
    %v577 = vld [vmem:[#allocation11 + $0x388] sm:$0xff]
    %v578 = vld [vmem:[#allocation11 + $0x390] sm:$0xff]
    %v579 = vld [vmem:[#allocation11 + $0x398] sm:$0xff]
    %v580 = vld [vmem:[#allocation11 + $0x3a0] sm:$0xff]
    %v581 = vld [vmem:[#allocation11 + $0x3a8] sm:$0xff]
    %v582 = vld [vmem:[#allocation11 + $0x3b0] sm:$0xff]
    %v583 = vld [vmem:[#allocation11 + $0x3b8] sm:$0xff]
    %v584 = vld [vmem:[#allocation11 + $0x3c0] sm:$0xff]
    %v585 = vld [vmem:[#allocation11 + $0x3c8] sm:$0xff]
    %v586 = vld [vmem:[#allocation11 + $0x3d0] sm:$0xff]
    %v587 = vld [vmem:[#allocation11 + $0x3d8] sm:$0xff]
    %v588 = vld [vmem:[#allocation11 + $0x3e0] sm:$0xff]
    %v589 = vld [vmem:[#allocation11 + $0x3e8] sm:$0xff]
    %v590 = vld [vmem:[#allocation11 + $0x3f0] sm:$0xff]
    %v591 = vld [vmem:[#allocation11 + $0x3f8] sm:$0xff]
    %592 = vmatpush.msra.mxu0 %v494
    %593 = vmatpush.msra.mxu0 %v492
    %594 = vmatpush.msra.mxu0 %v490
    %595 = vmatpush.msra.mxu0 %v488
    %596 = vmatpush.msra.mxu0 %v486
    %597 = vmatpush.msra.mxu0 %v484
    %598 = vmatpush.msra.mxu0 %v482
    %599 = vmatpush.msra.mxu0 %v480
    %600 = vmatpush.msra.mxu0 %v478
    %601 = vmatpush.msra.mxu0 %v476
    %602 = vmatpush.msra.mxu0 %v474
    %603 = vmatpush.msra.mxu0 %v472
    %604 = vmatpush.msra.mxu0 %v470
    %605 = vmatpush.msra.mxu0 %v468
    %606 = vmatpush.msra.mxu0 %v466
    %607 = vmatpush.msra.mxu0 %v464
    %608 = vmatmul.f32.gmra.mxu0 %v448
    %v609 = vpop.f32.mrf.mxu0
    %v610 = vadd.f32 0.0, %v609
    %611 = vmatmul.f32.gmra.mxu0 %v452
    %v612 = vpop.f32.mrf.mxu0
    %v613 = vadd.f32 0.0, %v612
    %614 = vdwg.mxu0
    %615 = vmatpush.msra.mxu0 %v526
    %616 = vmatpush.msra.mxu0 %v524
    %617 = vmatpush.msra.mxu0 %v522
    %618 = vmatpush.msra.mxu0 %v520
    %619 = vmatpush.msra.mxu0 %v518
    %620 = vmatpush.msra.mxu0 %v516
    %621 = vmatpush.msra.mxu0 %v514
    %622 = vmatpush.msra.mxu0 %v512
    %623 = vmatpush.msra.mxu0 %v510
    %624 = vmatpush.msra.mxu0 %v508
    %625 = vmatpush.msra.mxu0 %v506
    %626 = vmatpush.msra.mxu0 %v504
    %627 = vmatpush.msra.mxu0 %v502
    %628 = vmatpush.msra.mxu0 %v500
    %629 = vmatpush.msra.mxu0 %v498
    %630 = vmatpush.msra.mxu0 %v496
    %631 = vmatmul.f32.gmra.mxu0 %v449
    %v632 = vpop.f32.mrf.mxu0
    %v633 = vadd.f32 %v610, %v632
    %634 = vmatmul.f32.gmra.mxu0 %v453
    %v635 = vpop.f32.mrf.mxu0
    %v636 = vadd.f32 %v613, %v635
    %637 = vdwg.mxu0
    %638 = vmatpush.msra.mxu0 %v558
    %639 = vmatpush.msra.mxu0 %v556
    %640 = vmatpush.msra.mxu0 %v554
    %641 = vmatpush.msra.mxu0 %v552
    %642 = vmatpush.msra.mxu0 %v550
    %643 = vmatpush.msra.mxu0 %v548
    %644 = vmatpush.msra.mxu0 %v546
    %645 = vmatpush.msra.mxu0 %v544
    %646 = vmatpush.msra.mxu0 %v542
    %647 = vmatpush.msra.mxu0 %v540
    %648 = vmatpush.msra.mxu0 %v538
    %649 = vmatpush.msra.mxu0 %v536
    %650 = vmatpush.msra.mxu0 %v534
    %651 = vmatpush.msra.mxu0 %v532
    %652 = vmatpush.msra.mxu0 %v530
    %653 = vmatpush.msra.mxu0 %v528
    %654 = vmatmul.f32.gmra.mxu0 %v450
    %v655 = vpop.f32.mrf.mxu0
    %v656 = vadd.f32 %v633, %v655
    %657 = vmatmul.f32.gmra.mxu0 %v454
    %v658 = vpop.f32.mrf.mxu0
    %v659 = vadd.f32 %v636, %v658
    %660 = vdwg.mxu0
    %661 = vmatpush.msra.mxu0 %v590
    %662 = vmatpush.msra.mxu0 %v588
    %663 = vmatpush.msra.mxu0 %v586
    %664 = vmatpush.msra.mxu0 %v584
    %665 = vmatpush.msra.mxu0 %v582
    %666 = vmatpush.msra.mxu0 %v580
    %667 = vmatpush.msra.mxu0 %v578
    %668 = vmatpush.msra.mxu0 %v576
    %669 = vmatpush.msra.mxu0 %v574
    %670 = vmatpush.msra.mxu0 %v572
    %671 = vmatpush.msra.mxu0 %v570
    %672 = vmatpush.msra.mxu0 %v568
    %673 = vmatpush.msra.mxu0 %v566
    %674 = vmatpush.msra.mxu0 %v564
    %675 = vmatpush.msra.mxu0 %v562
    %676 = vmatpush.msra.mxu0 %v560
    %677 = vmatmul.f32.gmra.mxu0 %v451
    %v678 = vpop.f32.mrf.mxu0
    %v679 = vadd.f32 %v656, %v678
    %680 = vmatmul.f32.gmra.mxu0 %v455
    %v681 = vpop.f32.mrf.mxu0
    %v682 = vadd.f32 %v659, %v681
    %683 = vdwg.mxu0
    %684 = vmatpush.msra.mxu0 %v495
    %685 = vmatpush.msra.mxu0 %v493
    %686 = vmatpush.msra.mxu0 %v491
    %687 = vmatpush.msra.mxu0 %v489
    %688 = vmatpush.msra.mxu0 %v487
    %689 = vmatpush.msra.mxu0 %v485
    %690 = vmatpush.msra.mxu0 %v483
    %691 = vmatpush.msra.mxu0 %v481
    %692 = vmatpush.msra.mxu0 %v479
    %693 = vmatpush.msra.mxu0 %v477
    %694 = vmatpush.msra.mxu0 %v475
    %695 = vmatpush.msra.mxu0 %v473
    %696 = vmatpush.msra.mxu0 %v471
    %697 = vmatpush.msra.mxu0 %v469
    %698 = vmatpush.msra.mxu0 %v467
    %699 = vmatpush.msra.mxu0 %v465
    %700 = vmatmul.f32.gmra.mxu0 %v448
    %v701 = vpop.f32.mrf.mxu0
    %v702 = vadd.f32 0.0, %v701
    %703 = vmatmul.f32.gmra.mxu0 %v452
    %v704 = vpop.f32.mrf.mxu0
    %v705 = vadd.f32 0.0, %v704
    %706 = vdwg.mxu0
    %707 = vmatpush.msra.mxu0 %v527
    %708 = vmatpush.msra.mxu0 %v525
    %709 = vmatpush.msra.mxu0 %v523
    %710 = vmatpush.msra.mxu0 %v521
    %711 = vmatpush.msra.mxu0 %v519
    %712 = vmatpush.msra.mxu0 %v517
    %713 = vmatpush.msra.mxu0 %v515
    %714 = vmatpush.msra.mxu0 %v513
    %715 = vmatpush.msra.mxu0 %v511
    %716 = vmatpush.msra.mxu0 %v509
    %717 = vmatpush.msra.mxu0 %v507
    %718 = vmatpush.msra.mxu0 %v505
    %719 = vmatpush.msra.mxu0 %v503
    %720 = vmatpush.msra.mxu0 %v501
    %721 = vmatpush.msra.mxu0 %v499
    %722 = vmatpush.msra.mxu0 %v497
    %723 = vmatmul.f32.gmra.mxu0 %v449
    %v724 = vpop.f32.mrf.mxu0
    %v725 = vadd.f32 %v702, %v724
    %726 = vmatmul.f32.gmra.mxu0 %v453
    %v727 = vpop.f32.mrf.mxu0
    %v728 = vadd.f32 %v705, %v727
    %729 = vdwg.mxu0
    %730 = vmatpush.msra.mxu0 %v559
    %731 = vmatpush.msra.mxu0 %v557
    %732 = vmatpush.msra.mxu0 %v555
    %733 = vmatpush.msra.mxu0 %v553
    %734 = vmatpush.msra.mxu0 %v551
    %735 = vmatpush.msra.mxu0 %v549
    %736 = vmatpush.msra.mxu0 %v547
    %737 = vmatpush.msra.mxu0 %v545
    %738 = vmatpush.msra.mxu0 %v543
    %739 = vmatpush.msra.mxu0 %v541
    %740 = vmatpush.msra.mxu0 %v539
    %741 = vmatpush.msra.mxu0 %v537
    %742 = vmatpush.msra.mxu0 %v535
    %743 = vmatpush.msra.mxu0 %v533
    %744 = vmatpush.msra.mxu0 %v531
    %745 = vmatpush.msra.mxu0 %v529
    %746 = vmatmul.f32.gmra.mxu0 %v450
    %v747 = vpop.f32.mrf.mxu0
    %v748 = vadd.f32 %v725, %v747
    %749 = vmatmul.f32.gmra.mxu0 %v454
    %v750 = vpop.f32.mrf.mxu0
    %v751 = vadd.f32 %v728, %v750
    %752 = vdwg.mxu0
    %753 = vmatpush.msra.mxu0 %v591
    %754 = vmatpush.msra.mxu0 %v589
    %755 = vmatpush.msra.mxu0 %v587
    %756 = vmatpush.msra.mxu0 %v585
    %757 = vmatpush.msra.mxu0 %v583
    %758 = vmatpush.msra.mxu0 %v581
    %759 = vmatpush.msra.mxu0 %v579
    %760 = vmatpush.msra.mxu0 %v577
    %761 = vmatpush.msra.mxu0 %v575
    %762 = vmatpush.msra.mxu0 %v573
    %763 = vmatpush.msra.mxu0 %v571
    %764 = vmatpush.msra.mxu0 %v569
    %765 = vmatpush.msra.mxu0 %v567
    %766 = vmatpush.msra.mxu0 %v565
    %767 = vmatpush.msra.mxu0 %v563
    %768 = vmatpush.msra.mxu0 %v561
    %769 = vmatmul.f32.gmra.mxu0 %v451
    %v770 = vpop.f32.mrf.mxu0
    %v771 = vadd.f32 %v748, %v770
    %772 = vmatmul.f32.gmra.mxu0 %v455
    %v773 = vpop.f32.mrf.mxu0
    %v774 = vadd.f32 %v751, %v773
    %775 = vdwg.mxu0
    // Predicated region
    $region46: #{tpu_custom_call.1} parent=1 // pred_check
      %p776 = pneg %p89
    $region47: #{tpu_custom_call.1} parent=1 // pred_check_branch
      %778 = sbr.rel (%p776) target = $region49
    $region48: #{tpu_custom_call.1} parent=1 // pred_region
      %779 = vst [vmem:[#allocation3] sm:$0xff] %v679
      %780 = vst [vmem:[#allocation3 + $0x8] sm:$0xff] %v771
      %781 = vst [vmem:[#allocation3 + $0x10] sm:$0xff] %v682
      %782 = vst [vmem:[#allocation3 + $0x18] sm:$0xff] %v774
    $region49: #{tpu_custom_call.1} parent=1 // pred_fallthru
      _
    %p783 = scmp.ne.s32.totalorder 0, 0
    // Predicated region
    $region50: #{tpu_custom_call.1} parent=1 // pred_check
      %p784 = pneg %p783
    $region51: #{tpu_custom_call.1} parent=1 // pred_check_branch
      %786 = sbr.rel (%p784) target = $region53
    $region52: #{tpu_custom_call.1} parent=1 // pred_region
      %v787 = vld [vmem:[#allocation3] sm:$0xff]
      %v788 = vld [vmem:[#allocation3 + $0x8] sm:$0xff]
      %v789 = vld [vmem:[#allocation3 + $0x10] sm:$0xff]
      %v790 = vld [vmem:[#allocation3 + $0x18] sm:$0xff]
      %v791 = vadd.f32 %v787, %v679
      %v792 = vadd.f32 %v788, %v771
      %v793 = vadd.f32 %v789, %v682
      %v794 = vadd.f32 %v790, %v774
      %795 = vst [vmem:[#allocation3] sm:$0xff] %v791
      %796 = vst [vmem:[#allocation3 + $0x8] sm:$0xff] %v792
      %797 = vst [vmem:[#allocation3 + $0x10] sm:$0xff] %v793
      %798 = vst [vmem:[#allocation3 + $0x18] sm:$0xff] %v794
    $region53: #{tpu_custom_call.1} parent=1 // pred_fallthru
      _
    // Predicated region
    $region54: #{tpu_custom_call.1} parent=1 // pred_check
      %p799 = pneg %p89
    $region55: #{tpu_custom_call.1} parent=1 // pred_check_branch
      %801 = sbr.rel (%p799) target = $region57
    $region56: #{tpu_custom_call.1} parent=1 // pred_region
      %v802 = vld [vmem:[#allocation3] sm:$0xff]
      %v803 = vld [vmem:[#allocation3 + $0x8] sm:$0xff]
      %v804 = vld [vmem:[#allocation3 + $0x10] sm:$0xff]
      %v805 = vld [vmem:[#allocation3 + $0x18] sm:$0xff]
      %v806 = vld [vmem:[%s5] sm:$0x3]
      %v808 = vperm.slane %v806, 0
      %v809 = vperm.slane %v806, 1
      %v812 = vadd.f32 %v802, %v808
      %v813 = vadd.f32 %v803, %v809
      %v814 = vadd.f32 %v804, %v808
      %v815 = vadd.f32 %v805, %v809
      %816 = vst [vmem:[#allocation13] sm:$0xff] %v812
      %817 = vst [vmem:[#allocation13 + $0x8] sm:$0xff] %v813
      %818 = vst [vmem:[#allocation13 + $0x10] sm:$0xff] %v814
      %819 = vst [vmem:[#allocation13 + $0x18] sm:$0xff] %v815
    $region57: #{tpu_custom_call.1} parent=1 // pred_fallthru
      _
    // Predicated region
    $region58: #{tpu_custom_call.1} parent=1 // pred_check
      _
    $region59: #{tpu_custom_call.1} parent=1 // pred_check_branch
      %821 = sbr.rel (0) target = $region61
    $region60: #{tpu_custom_call.1} parent=1 // pred_region
      %823 = vsyncadd [#allocation7], 0
      %s824 = sshll.u32 [#allocation13], 4
      %s825 = int_to_ptr.vmem [resolvable:$true] %s824
      %s826 = sshll.u32 %s6, 4
      %s827 = int_to_ptr.hbm [resolvable:$true] %s826
      %832 = dma.vmem_to_hbm [thread:$0]  %s825, 512, %s827, [#allocation7], 256, 256, 16
    $region61: #{tpu_custom_call.1} parent=1 // pred_fallthru
      _
    // Predicated region
    $region62: #{tpu_custom_call.1} parent=1 // pred_check
      _
    $region63: #{tpu_custom_call.1} parent=1 // pred_check_branch
      %834 = sbr.rel (0) target = $region65
    $region64: #{tpu_custom_call.1} parent=1 // pred_region
      %836 = vsyncadd [#allocation15], 0
      %s837 = sshll.u32 [#allocation14], 4
      %s838 = int_to_ptr.vmem [resolvable:$true] %s837
      %s839 = sshll.u32 %s7, 4
      %s840 = int_to_ptr.hbm [resolvable:$true] %s839
      %845 = dma.vmem_to_hbm [thread:$0]  %s838, 1024, %s840, [#allocation15], 512, 512, 32
    $region65: #{tpu_custom_call.1} parent=1 // pred_fallthru
      _
    // Predicated region
    $region66: #{tpu_custom_call.1} parent=1 // pred_check
      _
    $region67: #{tpu_custom_call.1} parent=1 // pred_check_branch
      %847 = sbr.rel (0) target = $region69
    $region68: #{tpu_custom_call.1} parent=1 // pred_region
      %849 = dma.done [#allocation7], 512
    $region69: #{tpu_custom_call.1} parent=1 // pred_fallthru
      _
    // Predicated region
    $region70: #{tpu_custom_call.1} parent=1 // pred_check
      _
    $region71: #{tpu_custom_call.1} parent=1 // pred_check_branch
      %851 = sbr.rel (0) target = $region73
    $region72: #{tpu_custom_call.1} parent=1 // pred_region
      %853 = dma.done [#allocation15], 1024
    $region73: #{tpu_custom_call.1} parent=1 // pred_fallthru
      _
    %854 = vsyncpa [#allocation6], 1
    %855 = vsyncpa [#allocation9], 1
    %856 = vsyncpa [#allocation12], 1
    %857 = vsyncpa [#allocation7], 1
    %858 = vsyncpa [#allocation15], 1

</llo_original>
